<compile_context>
chip_gen: v7x
topology: tpu7x:2x2x1
jax: 0.10.0
libtpu: 0.0.40
codegen_flags: <defaults>
</compile_context>

<pallas_src>
import functools

import jax
import jax.numpy as jnp
from jax.experimental import pallas as pl
from jax.experimental.pallas import tpu as pltpu

EPS = 1e-5  # PyTorch BatchNorm2d default eps
GROWTH = 32
BN_SIZE = 4
BLOCK_CFG = (6, 12, 24, 16)
NUM_INIT_FEATURES = 64
BOTTLENECK = BN_SIZE * GROWTH  # 128
TAPS = 9

_VMEM = pl.BlockSpec(memory_space=pltpu.MemorySpace.VMEM)
_VMEM_LIMIT = 32 * 1024 * 1024  # explicit scoped-VMEM budget (portable v5e/v6e/v7x)


def _rup(x, m):
    return ((x + m - 1) // m) * m


# ----------------------------- Pallas kernels -----------------------------

def _conv0_kernel(a_ref, w_ref, s_ref, b_ref, o_ref):
    # o = relu((a @ w) * s + b)   -- conv0-as-matmul with fused norm0 + relu0 epilogue
    acc = jnp.dot(a_ref[...], w_ref[...], preferred_element_type=jnp.float32)
    o_ref[...] = jnp.maximum(acc * s_ref[...] + b_ref[...], 0.0).astype(o_ref.dtype)


def _bnrelu_matmul_kernel(x_ref, s_ref, b_ref, w_ref, o_ref):
    # o = relu(x * s + b) @ w     -- fused inference-BN + ReLU + 1x1 conv / linear
    x = jnp.maximum(x_ref[...].astype(jnp.float32) * s_ref[...] + b_ref[...], 0.0)
    o_ref[...] = jnp.dot(x.astype(jnp.bfloat16), w_ref[...],
                         preferred_element_type=jnp.float32).astype(o_ref.dtype)


def _dense_block_kernel(y_ref, s1_ref, b1_ref, w1_ref, s2_ref, b2_ref, w2_ref,
                        buf_ref, stage_ref, *, c0, n_layers, H, W):
    # One whole DenseNet block in a single kernel.  buf_ref (the output) is the VMEM-resident
    # channel buffer: [input features | layer0 out | layer1 out | ... | zero padding].
    # Per layer:
    #   act = relu(BN2(relu(BN1(buf[:, :cin])) @ W1))        (K trimmed to cin_p)
    #   out = conv3x3(act): 9 shifted+masked taps staged lane-dense -> ONE K=1152 matmul.
    # Flattened rows r=(n*H+i)*W+j; the (di,dj) tap reads row r+di*W+dj via pltpu.roll;
    # out-of-range spatial neighbours (and cross-batch wraps) are zeroed with validity masks
    # computed ONCE for the whole block.  BN happens before this implicit zero padding, so
    # the math matches pad-then-conv exactly.
    Mp = buf_ref.shape[0]
    center_only = (H == 1 and W == 1)   # 1x1 feature map: only the centre tap ever sees data

    # init persistent feature buffer: [y | zeros]
    buf_ref[...] = jnp.zeros_like(buf_ref)
    buf_ref[:, :c0] = y_ref[...]

    valid = None
    if not center_only:
        row = jax.lax.broadcasted_iota(jnp.int32, (Mp, 1), 0)
        ii = (row // W) % H
        jj = row % W
        valid = []
        for di in (-1, 0, 1):
            for dj in (-1, 0, 1):
                valid.append((ii + di >= 0) & (ii + di < H)
                             & (jj + dj >= 0) & (jj + dj < W))

    for li in range(n_layers):                       # static unroll -> static offsets
        cin = c0 + li * GROWTH
        cin_p = _rup(cin, 128)

        # BN1 + ReLU + 1x1 conv (K trimmed; columns >= cin are still zero in the buffer and
        # have zero scale/shift/weight rows, so they contribute exactly nothing)
        x = buf_ref[:, :cin_p].astype(jnp.float32)
        x = jnp.maximum(x * s1_ref[li, :, :cin_p] + b1_ref[li, :, :cin_p], 0.0)
        bott = jnp.dot(x.astype(jnp.bfloat16), w1_ref[li, :cin_p, :],
                       preferred_element_type=jnp.float32)
        act = jnp.maximum(bott * s2_ref[li] + b2_ref[li], 0.0)      # (Mp, 128) f32

        if center_only:
            out = jnp.dot(act.astype(jnp.bfloat16), w2_ref[li],
                          preferred_element_type=jnp.float32)
        else:
            for di in (-1, 0, 1):
                for dj in (-1, 0, 1):
                    tap = (di + 1) * 3 + (dj + 1)
                    shift = di * W + dj
                    rolled = act if shift == 0 else pltpu.roll(act, (-shift) % Mp, 0)
                    stage_ref[:, tap * BOTTLENECK:(tap + 1) * BOTTLENECK] = jnp.where(
                        valid[tap], rolled, 0.0).astype(jnp.bfloat16)
            out = jnp.dot(stage_ref[...], w2_ref[li],
                          preferred_element_type=jnp.float32)

        # 32-lane masked store, but only into VMEM (final HBM writeback is the full
        # lane-dense (Mp, cmax_p) buffer).
        buf_ref[:, cin:cin + GROWTH] = out[:, :GROWTH].astype(buf_ref.dtype)


# --------------------- cached pallas_call constructors ---------------------

@functools.lru_cache(maxsize=None)
def _conv0_call(Mp, tm, Kp, Np):
    return pl.pallas_call(
        _conv0_kernel,
        out_shape=jax.ShapeDtypeStruct((Mp, Np), jnp.bfloat16),
        grid=(Mp // tm,),
        in_specs=[pl.BlockSpec((tm, Kp), lambda i: (i, 0)),
                  pl.BlockSpec((Kp, Np), lambda i: (0, 0)),
                  pl.BlockSpec((1, Np), lambda i: (0, 0)),
                  pl.BlockSpec((1, Np), lambda i: (0, 0))],
        out_specs=pl.BlockSpec((tm, Np), lambda i: (i, 0)),
        compiler_params=pltpu.CompilerParams(
            dimension_semantics=("parallel",),        # both TensorCores on v7x
            vmem_limit_bytes=_VMEM_LIMIT))


@functools.lru_cache(maxsize=None)
def _bnrelu_matmul_call(Mp, Kp, Np, out_dtype):
    del Kp  # part of the cache key only
    return pl.pallas_call(
        _bnrelu_matmul_kernel,
        out_shape=jax.ShapeDtypeStruct((Mp, Np), out_dtype),
        in_specs=[_VMEM] * 4, out_specs=_VMEM,
        compiler_params=pltpu.CompilerParams(vmem_limit_bytes=_VMEM_LIMIT))


@functools.lru_cache(maxsize=None)
def _dense_block_call(Mp, c0, cmax_p, n_layers, H, W):
    center_only = (H == 1 and W == 1)
    stage_w = BOTTLENECK if center_only else TAPS * BOTTLENECK
    kernel = functools.partial(_dense_block_kernel, c0=c0, n_layers=n_layers, H=H, W=W)
    return pl.pallas_call(
        kernel,
        out_shape=jax.ShapeDtypeStruct((Mp, cmax_p), jnp.bfloat16),
        in_specs=[_VMEM] * 7, out_specs=_VMEM,
        scratch_shapes=[pltpu.VMEM((Mp, stage_w), jnp.bfloat16)],
        compiler_params=pltpu.CompilerParams(vmem_limit_bytes=_VMEM_LIMIT))


# ------------------------------- JAX glue ----------------------------------

def _bn_scale_shift(bn):
    scale = bn["gamma"] / jnp.sqrt(bn["var"] + EPS)
    shift = bn["beta"] - bn["mean"] * scale
    return scale, shift


def _conv_weight_to_mat(w):
    # PyTorch conv weight (Cout, Cin, KH, KW) -> im2col matmul weight (KH*KW*Cin, Cout)
    cout, cin, kh, kw = w.shape
    return jnp.transpose(w, (2, 3, 1, 0)).reshape(kh * kw * cin, cout)


def _pad_to(a, shape):
    pads = [(0, t - s) for s, t in zip(a.shape, shape)]
    return jnp.pad(a, pads)


def im2col(x, kh, kw, stride, pad):
    # x: (N, H, W, C) -> (N*OH*OW, KH*KW*C); patches concatenated along channels (lane-dense)
    n, h, w, c = x.shape
    xp = jnp.pad(x, ((0, 0), (pad, pad), (pad, pad), (0, 0)))
    oh = (h + 2 * pad - kh) // stride + 1
    ow = (w + 2 * pad - kw) // stride + 1
    patches = [xp[:, i:i + stride * oh:stride, j:j + stride * ow:stride, :]
               for i in range(kh) for j in range(kw)]
    cols = jnp.concatenate(patches, axis=-1)
    return cols.reshape(n * oh * ow, kh * kw * c), oh, ow


def max_pool_3x3_s2_p1(x):
    init = jnp.array(-jnp.inf, x.dtype)
    return jax.lax.reduce_window(
        x, init, jax.lax.max, (1, 3, 3, 1), (1, 2, 2, 1),
        ((0, 0), (1, 1), (1, 1), (0, 0)))


def avg_pool_2x2(x):
    s = jax.lax.reduce_window(x, jnp.array(0.0, x.dtype), jax.lax.add,
                              (1, 2, 2, 1), (1, 2, 2, 1), "VALID")
    return s * 0.25


# --------------------------- parameter preparation --------------------------
# One-time: fold BN into (scale, shift), convert conv weights to matmul layout, stack each
# dense block's per-layer weights into single arrays, pad to (8,128)-aligned shapes, cast MXU
# operands to bf16.  Channels that do not exist yet for a given layer get zero scale/shift
# and zero weight rows, so they contribute exactly nothing.
# NOTE: prep must contain only array leaves (it is a traced jit argument).

def prepare_params(params):
    prep = {}

    w0 = _conv_weight_to_mat(params["conv0"])                        # (49, 64)
    k0p, c0p = _rup(w0.shape[0], 128), _rup(w0.shape[1], 128)
    prep["conv0_w"] = _pad_to(w0, (k0p, c0p)).astype(jnp.bfloat16)
    s0, b0 = _bn_scale_shift(params["norm0"])
    prep["conv0_s"] = _pad_to(s0[None, :], (1, c0p))
    prep["conv0_b"] = _pad_to(b0[None, :], (1, c0p))

    blocks = []
    c = NUM_INIT_FEATURES
    for raw in params["blocks"]:
        n_layers = len(raw["layers"])
        cmax_p = _rup(c + n_layers * GROWTH, 128)
        s1l, b1l, w1l, s2l, b2l, w2l = [], [], [], [], [], []
        for li, lp in enumerate(raw["layers"]):
            s1, b1 = _bn_scale_shift(lp["norm1"])
            s2, b2 = _bn_scale_shift(lp["norm2"])
            w1 = _conv_weight_to_mat(lp["conv1"])                    # (cin, 128)
            w2 = _conv_weight_to_mat(lp["conv2"])                    # (1152, 32)
            s1l.append(_pad_to(s1[None, :], (1, cmax_p)))
            b1l.append(_pad_to(b1[None, :], (1, cmax_p)))
            w1l.append(_pad_to(w1, (cmax_p, BOTTLENECK)).astype(jnp.bfloat16))
            s2l.append(s2[None, :])
            b2l.append(b2[None, :])
            w2l.append(_pad_to(w2, (TAPS * BOTTLENECK, 128)).astype(jnp.bfloat16))
        blk = {
            "s1": jnp.stack(s1l), "b1": jnp.stack(b1l),              # (L, 1, cmax_p) f32
            "w1": jnp.stack(w1l),                                    # (L, cmax_p, 128) bf16
            "s2": jnp.stack(s2l), "b2": jnp.stack(b2l),              # (L, 1, 128) f32
            "w2": jnp.stack(w2l),                                    # (L, 1152, 128) bf16
        }
        c = c + n_layers * GROWTH
        if "trans_norm" in raw:
            st, bt = _bn_scale_shift(raw["trans_norm"])
            wt = _conv_weight_to_mat(raw["trans_conv"])              # (c, c//2), 128-aligned
            blk["trans"] = {"s": st[None, :], "b": bt[None, :],
                            "w": wt.astype(jnp.bfloat16)}
            c //= 2
        blocks.append(blk)
    prep["blocks"] = blocks

    s5, b5 = _bn_scale_shift(params["norm5"])
    prep["s5"] = s5[None, :]
    prep["b5"] = b5[None, :]
    ncls = params["fc_w"].shape[0]
    fcw = params["fc_w"].T                                           # (1024, ncls)
    prep["fc_w"] = _pad_to(fcw, (fcw.shape[0], _rup(ncls, 128))).astype(jnp.bfloat16)
    prep["fc_b"] = params["fc_b"]
    return prep


# -------------------------------- forward ----------------------------------

def forward(prep, x_nchw):
    x = jnp.transpose(x_nchw, (0, 2, 3, 1)).astype(jnp.float32)      # NCHW -> NHWC
    n = x.shape[0]

    # stem: conv0 (7x7 s2 p3, no bias) with fused norm0+relu0 epilogue, then maxpool
    cols, oh, ow = im2col(x, 7, 7, 2, 3)
    M = cols.shape[0]
    Mp = _rup(M, 8)
    tm = 128 if Mp % 128 == 0 else Mp                                # M-grid (v7x: 2 TCs)
    k0p, c0p = prep["conv0_w"].shape
    cols = _pad_to(cols, (Mp, k0p)).astype(jnp.bfloat16)
    y = _conv0_call(Mp, tm, k0p, c0p)(cols, prep["conv0_w"],
                                      prep["conv0_s"], prep["conv0_b"])
    y = y[:M, :NUM_INIT_FEATURES].reshape(n, oh, ow, NUM_INIT_FEATURES)
    y = max_pool_3x3_s2_p1(y)                                        # bf16

    # dense blocks (+ transitions): one fused kernel per block, one per transition
    for blk in prep["blocks"]:
        n_, h_, w_, c0 = y.shape
        n_layers, cmax_p = blk["w1"].shape[0], blk["w1"].shape[1]
        M = n_ * h_ * w_
        Mp = _rup(M, 8)
        yf = _pad_to(y.reshape(M, c0), (Mp, c0)).astype(jnp.bfloat16)
        center_only = (h_ == 1 and w_ == 1)
        # 1x1 feature map: only the centre tap of the 3x3 kernel can ever be valid
        w2 = (blk["w2"][:, 4 * BOTTLENECK:5 * BOTTLENECK, :] if center_only
              else blk["w2"])
        buf = _dense_block_call(Mp, c0, cmax_p, n_layers, h_, w_)(
            yf, blk["s1"], blk["b1"], blk["w1"], blk["s2"], blk["b2"], w2)
        c_cur = c0 + n_layers * GROWTH
        y = buf[:M, :c_cur].reshape(n_, h_, w_, c_cur)               # bf16

        if "trans" in blk:
            t = blk["trans"]
            c_out = t["w"].shape[1]
            flat = _pad_to(y.reshape(M, c_cur), (Mp, c_cur))
            z = _bnrelu_matmul_call(Mp, c_cur, c_out, jnp.bfloat16)(
                flat, t["s"], t["b"], t["w"])
            y = avg_pool_2x2(z[:M].reshape(n_, h_, w_, c_out))

    # head: norm5 + relu + global avg pool + (Dropout eval = identity) + Linear.
    # The Linear commutes with the spatial mean, so BN5+ReLU+Linear is one fused kernel.
    n_, h_, w_, c_ = y.shape
    M = n_ * h_ * w_
    Mp = _rup(M, 8)
    ncls_p = prep["fc_w"].shape[1]
    flat = _pad_to(y.reshape(M, c_), (Mp, c_))
    z = _bnrelu_matmul_call(Mp, c_, ncls_p, jnp.float32)(
        flat, prep["s5"], prep["b5"], prep["fc_w"])
    ncls = prep["fc_b"].shape[0]
    logits = z[:M, :ncls].reshape(n_, h_ * w_, ncls).mean(axis=1) + prep["fc_b"]
    return logits


forward_jit = jax.jit(forward)


# --------------------- roll-convention unit check (review #3) ---------------

def _roll_check_kernel(x_ref, o_ref):
    o_ref[...] = pltpu.roll(x_ref[...], 3, 0)


def _verify_roll_convention():
    x = jnp.arange(8 * 128, dtype=jnp.float32).reshape(8, 128)
    y = pl.pallas_call(_roll_check_kernel,
                       out_shape=jax.ShapeDtypeStruct((8, 128), jnp.float32),
                       in_specs=[_VMEM], out_specs=_VMEM)(x)
    assert bool(jnp.array_equal(y, jnp.roll(x, 3, 0))), "pltpu.roll convention mismatch"


# ----------------------------- parameter init ------------------------------

def init_params(key, num_classes=3):
    def conv_init(k, cout, cin, kh, kw):
        fan_in = cin * kh * kw
        return jax.random.normal(k, (cout, cin, kh, kw), jnp.float32) / jnp.sqrt(fan_in)

    def bn_init(k, c):
        k1, k2, k3 = jax.random.split(k, 3)
        return {
            "gamma": 1.0 + 0.1 * jax.random.normal(k1, (c,), jnp.float32),
            "beta": 0.1 * jax.random.normal(k2, (c,), jnp.float32),
            "mean": 0.1 * jax.random.normal(k3, (c,), jnp.float32),
            "var": jnp.ones((c,), jnp.float32),
        }

    keys = iter(jax.random.split(key, 1024))
    params = {
        "conv0": conv_init(next(keys), NUM_INIT_FEATURES, 1, 7, 7),
        "norm0": bn_init(next(keys), NUM_INIT_FEATURES),
    }
    c = NUM_INIT_FEATURES
    blocks = []
    for bi, n_layers in enumerate(BLOCK_CFG):
        layers = []
        for li in range(n_layers):
            cin = c + li * GROWTH
            layers.append({
                "norm1": bn_init(next(keys), cin),
                "conv1": conv_init(next(keys), BN_SIZE * GROWTH, cin, 1, 1),
                "norm2": bn_init(next(keys), BN_SIZE * GROWTH),
                "conv2": conv_init(next(keys), GROWTH, BN_SIZE * GROWTH, 3, 3),
            })
        c = c + n_layers * GROWTH
        block = {"layers": layers}
        if bi != len(BLOCK_CFG) - 1:
            block["trans_norm"] = bn_init(next(keys), c)
            block["trans_conv"] = conv_init(next(keys), c // 2, c, 1, 1)
            c = c // 2
        blocks.append(block)
    params["blocks"] = blocks
    params["norm5"] = bn_init(next(keys), c)
    kw_, kb_ = jax.random.split(next(keys))
    params["fc_w"] = jax.random.normal(kw_, (num_classes, c), jnp.float32) / jnp.sqrt(c)
    params["fc_b"] = 0.01 * jax.random.normal(kb_, (num_classes,), jnp.float32)
    return params


if __name__ == "__main__":
    _verify_roll_convention()

    key = jax.random.PRNGKey(0)
    kp, kx = jax.random.split(key)
    params = init_params(kp, num_classes=3)
    prep = prepare_params(params)   # one-time padded/stacked/bf16/BN-folded weights

    # Modified conv0 takes 1-channel input (grayscale), PyTorch NCHW layout.
    x = jax.random.normal(kx, (2, 1, 32, 32), jnp.float32)

    out = forward_jit(prep, x)
    out = jax.block_until_ready(out)
    assert out.shape == (2, 3), out.shape
    assert bool(jnp.all(jnp.isfinite(out)))
    print("KERNEL_OK")
</pallas_src>

<mosaic_0001>
module attributes {stable_mosaic.version = 11 : i64} {
  func.func @_roll_check_kernel(%arg0: memref<8x128xf32, #tpu.memory_space<vmem>>, %arg1: memref<8x128xf32, #tpu.memory_space<vmem>>) attributes {dimension_semantics = [], scalar_prefetch = 0 : i64, scratch_operands = 0 : i64, tpu.core_type = #tpu.core_type<tc>} {
    %c0 = arith.constant 0 : index
    %c0_0 = arith.constant 0 : index
    %0 = vector.load %arg0[%c0, %c0_0] : memref<8x128xf32, #tpu.memory_space<vmem>>, vector<8x128xf32>
    %c3_i32 = arith.constant 3 : i32
    %1 = tpu.dynamic_rotate %0 by %c3_i32 dim 0 : vector<8x128xf32>, i32 -> vector<8x128xf32>
    %c0_1 = arith.constant 0 : index
    %c0_2 = arith.constant 0 : index
    %2 = vector.load %arg1[%c0_1, %c0_2] : memref<8x128xf32, #tpu.memory_space<vmem>>, vector<8x128xf32>
    tpu.vector_store %arg1[%c0_1, %c0_2], %1 {strides = array<i32>} : memref<8x128xf32, #tpu.memory_space<vmem>>, vector<8x128xf32>,
    return
  }
}

</mosaic_0001>

<llo_original>
// kernel: tpu_custom_call.1
$region0: #{tpu_custom_call.1}
  #allocation0 [shape = 'u32[]', space=smem, size = 0x4, offset = 0x4, fixed_abs, tag = 'smem constant byte address 0x4 - core index']
  #allocation1 [shape = 'u32[144,128]{1,0:T(1,128)}', space=vmem, size = 0x12000, scoped, tag = 'internal scratch']
  %s0 = inlined_call_operand.hbm [shape: f32[8,128], index: 0, kind: input, shape index: {}]
  %s1 = inlined_call_operand.hbm [shape: f32[8,128], index: 1, kind: output, shape index: {}]
  %s2 = sld [smem:[#allocation0]]
  $region18: #{tpu_custom_call.1} parent=0
    _
  %s4 = ssub.s32 1, %s2
  %s5 = scalar_select 0, %s4, %s2
  $region1: #{tpu_custom_call.1} parent=0
    #allocation2 [shape = 'u8[4096]{0}', space=vmem, size = 0x1000, scoped, tag = 'input window, operand 0, single buffered']
    #allocation3 [shape = 's32[1]{0}', space=sflag, size = 0x4, scoped, tag = 'scoped memory for tpu_custom_call.1']
    #allocation4 [shape = 's32[1]{0}', space=sflag, size = 0x4, scoped, tag = 'scoped memory for tpu_custom_call.1']
    #allocation5 [shape = 'u8[4096]{0}', space=vmem, size = 0x1000, scoped, tag = 'output window, operand 0, single buffered']
    %6 = vsyncpa [#allocation3], 0
    %7 = vsyncpa [#allocation4], 0
    // Predicated region
    $region2: #{tpu_custom_call.1} parent=1 // pred_check
      _
    $region3: #{tpu_custom_call.1} parent=1 // pred_check_branch
      %9 = sbr.rel (0) target = $region5
    $region4: #{tpu_custom_call.1} parent=1 // pred_region
      %s11 = ssub.s32 128, 128
      %12 = vsyncadd [#allocation3], %s11
      %s14 = sshll.u32 [#allocation2], 4
      %s15 = int_to_ptr.vmem [resolvable:$true] %s14
      %17 = dma.hbm_to_vmem [thread:$0]  %s0, 128, %s15, [#allocation3]
    $region5: #{tpu_custom_call.1} parent=1 // pred_fallthru
      _
    // Predicated region
    $region6: #{tpu_custom_call.1} parent=1 // pred_check
      _
    $region7: #{tpu_custom_call.1} parent=1 // pred_check_branch
      %19 = sbr.rel (0) target = $region9
    $region8: #{tpu_custom_call.1} parent=1 // pred_region
      %20 = dma.done [#allocation3], 128
    $region9: #{tpu_custom_call.1} parent=1 // pred_fallthru
      _
    %v21 = vld [vmem:[#allocation2] sm:$0xff]
    %v22 = vrot.slane %v21, 5
    %23 = vst [vmem:[#allocation5] sm:$0xff] %v22
    // Predicated region
    $region10: #{tpu_custom_call.1} parent=1 // pred_check
      _
    $region11: #{tpu_custom_call.1} parent=1 // pred_check_branch
      %25 = sbr.rel (0) target = $region13
    $region12: #{tpu_custom_call.1} parent=1 // pred_region
      %s27 = ssub.s32 128, 128
      %28 = vsyncadd [#allocation4], %s27
      %s30 = sshll.u32 [#allocation5], 4
      %s31 = int_to_ptr.vmem [resolvable:$true] %s30
      %33 = dma.vmem_to_hbm [thread:$0]  %s31, 128, %s1, [#allocation4]
    $region13: #{tpu_custom_call.1} parent=1 // pred_fallthru
      _
    // Predicated region
    $region14: #{tpu_custom_call.1} parent=1 // pred_check
      _
    $region15: #{tpu_custom_call.1} parent=1 // pred_check_branch
      %35 = sbr.rel (0) target = $region17
    $region16: #{tpu_custom_call.1} parent=1 // pred_region
      %36 = dma.done [#allocation4], 128
    $region17: #{tpu_custom_call.1} parent=1 // pred_fallthru
      _
    %37 = vsyncpa [#allocation3], 1
    %38 = vsyncpa [#allocation4], 1

</llo_original>
